<compile_context>
chip_gen: v6e
topology: v6e:2x2x1
jax: 0.10.0
libtpu: 0.0.40
codegen_flags: <defaults>
</compile_context>

<pallas_src>
import functools

import jax
import jax.numpy as jnp
from jax.experimental import pallas as pl
from jax.experimental.pallas import tpu as pltpu


_VMEM_LIMIT_BYTES = 32 * 1024 * 1024    # explicit scoped-VMEM limit (v5e default is only 16 MiB)
_VMEM_BUDGET_BYTES = 24 * 1024 * 1024   # tile-sizing budget: headroom under the limit / v7x VMEM
_TARGET_STEP_BYTES = 1 * 1024 * 1024    # aim for >= ~1 MB of x traffic per grid step
_MAX_BLOCK_N = 8192                     # batch-column (lane) tile cap


def _round_up(x, m):
    return ((x + m - 1) // m) * m


def _make_mlp_kernel(num_linear, compute_dtype):
    """Kernel computing the whole MLP for one (in_dim, bn) batch-column tile.

    refs = (xt_ref, w0_ref, b0_ref, w1_ref, b1_ref, ..., o_ref)
    xt_ref: (in_dim, bn) f32, batch on lanes.  w_i: (out_i, in_i) compute_dtype, resident in
    VMEM (native PyTorch layout, no transpose).  b_i: (out_i, 1) f32 (lane broadcast).
    """

    def kernel(*refs):
        xt_ref = refs[0]
        o_ref = refs[-1]
        # x arrives f32; cast on the VPU (hidden under the DMA) — no wrapper-side convert pass.
        h = xt_ref[...].astype(compute_dtype)
        for i in range(num_linear):
            w_ref = refs[1 + 2 * i]
            b_ref = refs[2 + 2 * i]
            # (out_i, in_i) @ (in_i, bn) -> (out_i, bn), f32 accumulation on the MXU;
            # batch on lanes keeps every operand and the result lane-dense.
            acc = jnp.dot(w_ref[...], h, preferred_element_type=jnp.float32) + b_ref[...]
            if i < num_linear - 1:
                # ReLU in f32 (v5e has no bf16 VALU); nn.Dropout == identity in eval mode.
                # Cast back so the next matmul is compute_dtype x compute_dtype on the MXU.
                h = jnp.maximum(acc, 0.0).astype(compute_dtype)
            else:
                h = jax.nn.sigmoid(acc)  # final sigmoid in f32 (EUP)
        o_ref[...] = h.astype(o_ref.dtype)

    return kernel


def _pick_block_n(batch, dims, act_bytes):
    """Batch-column (lane) tile size: multiple of 128, sized so each grid step moves >= ~1 MB
    of x traffic (below that the ~0.35 us fixed per-step overhead dominates, and a v7x megacore
    split would only pay that overhead twice), capped by a VMEM budget and _MAX_BLOCK_N.
    If the whole batch fits one such tile, use a single full-batch tile (grid of 1)."""
    in_dim, out_dim = dims[0], dims[-1]
    max_dim = max(dims)
    # resident single-copy weights + f32 biases
    weight_bytes = sum(dims[i] * dims[i + 1] * act_bytes + dims[i + 1] * 4
                       for i in range(len(dims) - 1))
    # per batch column: double-buffered f32 x tile + double-buffered f32 out tile
    # + ~2 intermediate activation slabs of the widest layer (f32 acc + compute_dtype copy)
    per_col = 2 * in_dim * 4 + 2 * out_dim * 4 + max_dim * (4 + act_bytes)
    vmem_cap = max(128, ((_VMEM_BUDGET_BYTES - weight_bytes) // per_col) // 128 * 128)
    traffic_target = _round_up(max(1, _TARGET_STEP_BYTES // (in_dim * 4)), 128)
    bn = min(_MAX_BLOCK_N, vmem_cap, max(traffic_target, 128))
    if bn >= batch:
        return batch  # one full-batch tile (block == full array dim satisfies the lane rule)
    return bn


def build_classification_params(key, input_shape, hidden_size, output_size, nb_layers):
    """Deterministic PyTorch-style init: U(-1/sqrt(fan_in), 1/sqrt(fan_in)); w is (out, in)."""
    dims = [input_shape] + [hidden_size] * nb_layers + [output_size]
    params = []
    for i in range(len(dims) - 1):
        fan_in, fan_out = dims[i], dims[i + 1]
        key, kw, kb = jax.random.split(key, 3)
        bound = 1.0 / jnp.sqrt(jnp.float32(fan_in))
        w = jax.random.uniform(kw, (fan_out, fan_in), jnp.float32, -bound, bound)  # (out, in)
        b = jax.random.uniform(kb, (fan_out,), jnp.float32, -bound, bound)
        params.append((w, b))
    return params


def prepare_params(params, compute_dtype=jnp.bfloat16):
    """One-time (outside-jit) conversion of PyTorch-layout params into kernel-ready arrays:
    weights stay (out, in) — the lane-dense kernel needs NO transpose — pre-cast to
    compute_dtype; biases -> (out, 1) f32.  Store the result; do not redo per forward call."""
    flat = []
    for (w, b) in params:
        flat.append(jnp.asarray(w, compute_dtype))
        flat.append(jnp.asarray(b, jnp.float32).reshape(-1, 1))
    return tuple(flat)


def _forward_batch_minor(xt, flat_wb, block_n):
    """xt: (in_dim, B) f32 -> (out_dim, B) f32."""
    in_dim, B = xt.shape
    num_linear = len(flat_wb) // 2
    dims = [in_dim] + [flat_wb[2 * i].shape[0] for i in range(num_linear)]
    out_dim = dims[-1]
    compute_dtype = flat_wb[0].dtype
    act_bytes = jnp.dtype(compute_dtype).itemsize

    if block_n is None:
        bn = _pick_block_n(B, dims, act_bytes)
    else:
        bn = int(block_n)
        if bn % 128 != 0:
            bn = max(128, (bn // 128) * 128)  # lane rule: multiple of 128 unless == full batch
        if bn >= B:
            bn = B

    grid = (pl.cdiv(B, bn),)

    # x^T streams in batch-column tiles (default double-buffering is enough for a short grid);
    # weights/biases sit resident in VMEM (single copy, one DMA, no per-step re-issue).
    resident_vmem = pl.BlockSpec(memory_space=pltpu.MemorySpace.VMEM)
    in_specs = [pl.BlockSpec((in_dim, bn), lambda j: (0, j))]
    in_specs += [resident_vmem] * len(flat_wb)
    out_specs = pl.BlockSpec((out_dim, bn), lambda j: (0, j))

    kernel = _make_mlp_kernel(num_linear, compute_dtype)

    return pl.pallas_call(
        kernel,
        out_shape=jax.ShapeDtypeStruct((out_dim, B), jnp.float32),
        grid_spec=pltpu.PrefetchScalarGridSpec(
            num_scalar_prefetch=0,
            grid=grid,
            in_specs=in_specs,
            out_specs=out_specs,
        ),
        compiler_params=pltpu.CompilerParams(
            dimension_semantics=("parallel",),
            vmem_limit_bytes=_VMEM_LIMIT_BYTES,
        ),
    )(xt, *flat_wb)


@functools.partial(jax.jit, static_argnames=("block_n",))
def build_classification_forward_batch_minor(xt, flat_wb, block_n=None):
    """Kernel-native entry point: xt (in_dim, B) f32 -> (out_dim, B) f32.  Zero layout ops."""
    return _forward_batch_minor(xt, flat_wb, block_n)


@functools.partial(jax.jit, static_argnames=("block_n",))
def build_classification_forward(x, flat_wb, block_n=None):
    """PyTorch-contract entry point: x (B, in_dim) f32 -> (B, out_dim) f32.

    Pays one small boundary transpose on each side so the kernel itself stays lane-dense
    (batch on lanes).  Callers that can produce/consume batch-minor layout should use
    build_classification_forward_batch_minor and skip both transposes.
    """
    return _forward_batch_minor(x.T, flat_wb, block_n).T


def _reference_forward(x, params, compute_dtype=jnp.bfloat16):
    """Pure-JAX reference with the same precision policy as the kernel."""
    h = x.T.astype(compute_dtype)  # (in_dim, B)
    for i, (w, b) in enumerate(params):
        acc = jnp.dot(w.astype(compute_dtype), h, preferred_element_type=jnp.float32)
        acc = acc + b.astype(jnp.float32).reshape(-1, 1)
        if i < len(params) - 1:
            h = jnp.maximum(acc, 0.0).astype(compute_dtype)
        else:
            h = jax.nn.sigmoid(acc)
    return h.T


if __name__ == "__main__":
    # Shapes consistent with the module: input_shape=32, hidden=32, output=16, nb_layers=2.
    input_shape = 32
    hidden_size = 32
    output_size = 16
    nb_layers = 2

    key = jax.random.PRNGKey(0)
    kx, kp = jax.random.split(key)
    params = build_classification_params(kp, input_shape, hidden_size, output_size, nb_layers)
    flat_wb = prepare_params(params)  # one-time weight cast/relayout, outside the jitted forward

    # (batch, block_n): auto single-tile paths, plus an explicit multi-step grid with a padded
    # last tile (300 cols, 128-wide blocks) to exercise the tiled / index_map path.
    for batch, block_n in ((2, None), (50, None), (300, 128)):
        xb = jax.random.normal(jax.random.fold_in(kx, batch), (batch, input_shape), jnp.float32)
        out = jax.block_until_ready(build_classification_forward(xb, flat_wb, block_n=block_n))
        ref = _reference_forward(xb, params)
        assert out.shape == (batch, output_size), out.shape
        err = float(jnp.max(jnp.abs(out - ref)))
        assert err < 2e-3, err

    print("KERNEL_OK")
</pallas_src>

<mosaic_0001>
module attributes {stable_mosaic.version = 11 : i64} {
  func.func @kernel(%arg0: i32, %arg1: memref<32x2xf32, #tpu.memory_space<vmem>>, %arg2: memref<32x32xbf16, #tpu.memory_space<vmem>>, %arg3: memref<32x1xf32, #tpu.memory_space<vmem>>, %arg4: memref<32x32xbf16, #tpu.memory_space<vmem>>, %arg5: memref<32x1xf32, #tpu.memory_space<vmem>>, %arg6: memref<16x32xbf16, #tpu.memory_space<vmem>>, %arg7: memref<16x1xf32, #tpu.memory_space<vmem>>, %arg8: memref<16x2xf32, #tpu.memory_space<vmem>>) attributes {dimension_semantics = [#tpu.dimension_semantics<parallel>], iteration_bounds = array<i64: 1>, scalar_prefetch = 0 : i64, scratch_operands = 0 : i64, tpu.core_type = #tpu.core_type<tc>, window_params = [{transform_indices = @transform_0, window_bounds = array<i64: 32, 2>}, {pipeline_mode = #tpu.pipeline_mode<synchronous>, transform_indices = @transform_1, window_bounds = array<i64: 32, 32>}, {pipeline_mode = #tpu.pipeline_mode<synchronous>, transform_indices = @transform_2, window_bounds = array<i64: 32, 1>}, {pipeline_mode = #tpu.pipeline_mode<synchronous>, transform_indices = @transform_3, window_bounds = array<i64: 32, 32>}, {pipeline_mode = #tpu.pipeline_mode<synchronous>, transform_indices = @transform_4, window_bounds = array<i64: 32, 1>}, {pipeline_mode = #tpu.pipeline_mode<synchronous>, transform_indices = @transform_5, window_bounds = array<i64: 16, 32>}, {pipeline_mode = #tpu.pipeline_mode<synchronous>, transform_indices = @transform_6, window_bounds = array<i64: 16, 1>}, {transform_indices = @transform_7, window_bounds = array<i64: 16, 2>}]} {
    %c0 = arith.constant 0 : index
    %c0_0 = arith.constant 0 : index
    %0 = vector.load %arg1[%c0, %c0_0] : memref<32x2xf32, #tpu.memory_space<vmem>>, vector<32x2xf32>
    %1 = arith.truncf %0 : vector<32x2xf32> to vector<32x2xbf16>
    %c0_1 = arith.constant 0 : index
    %c0_2 = arith.constant 0 : index
    %2 = vector.load %arg2[%c0_1, %c0_2] : memref<32x32xbf16, #tpu.memory_space<vmem>>, vector<32x32xbf16>
    %cst = arith.constant dense<0.000000e+00> : vector<32x2xf32>
    %3 = tpu.matmul %2, %1, %cst {dimension_numbers = #tpu.dot_dimension_numbers<[1], [0], [0], [1], [0, 0, 1, 1], [], []>} : vector<32x32xbf16>, vector<32x2xbf16>, vector<32x2xf32> -> vector<32x2xf32>
    %c0_3 = arith.constant 0 : index
    %c0_4 = arith.constant 0 : index
    %4 = vector.load %arg3[%c0_3, %c0_4] : memref<32x1xf32, #tpu.memory_space<vmem>>, vector<32x1xf32>
    %5 = vector.broadcast %4 : vector<32x1xf32> to vector<32x2xf32>
    %6 = arith.addf %3, %5 : vector<32x2xf32>
    %cst_5 = arith.constant 0.000000e+00 : f32
    %7 = vector.broadcast %cst_5 : f32 to vector<32x2xf32>
    %8 = arith.maximumf %6, %7 : vector<32x2xf32>
    %9 = arith.truncf %8 : vector<32x2xf32> to vector<32x2xbf16>
    %c0_6 = arith.constant 0 : index
    %c0_7 = arith.constant 0 : index
    %10 = vector.load %arg4[%c0_6, %c0_7] : memref<32x32xbf16, #tpu.memory_space<vmem>>, vector<32x32xbf16>
    %cst_8 = arith.constant dense<0.000000e+00> : vector<32x2xf32>
    %11 = tpu.matmul %10, %9, %cst_8 {dimension_numbers = #tpu.dot_dimension_numbers<[1], [0], [0], [1], [0, 0, 1, 1], [], []>} : vector<32x32xbf16>, vector<32x2xbf16>, vector<32x2xf32> -> vector<32x2xf32>
    %c0_9 = arith.constant 0 : index
    %c0_10 = arith.constant 0 : index
    %12 = vector.load %arg5[%c0_9, %c0_10] : memref<32x1xf32, #tpu.memory_space<vmem>>, vector<32x1xf32>
    %13 = vector.broadcast %12 : vector<32x1xf32> to vector<32x2xf32>
    %14 = arith.addf %11, %13 : vector<32x2xf32>
    %cst_11 = arith.constant 0.000000e+00 : f32
    %15 = vector.broadcast %cst_11 : f32 to vector<32x2xf32>
    %16 = arith.maximumf %14, %15 : vector<32x2xf32>
    %17 = arith.truncf %16 : vector<32x2xf32> to vector<32x2xbf16>
    %c0_12 = arith.constant 0 : index
    %c0_13 = arith.constant 0 : index
    %18 = vector.load %arg6[%c0_12, %c0_13] : memref<16x32xbf16, #tpu.memory_space<vmem>>, vector<16x32xbf16>
    %cst_14 = arith.constant dense<0.000000e+00> : vector<16x2xf32>
    %19 = tpu.matmul %18, %17, %cst_14 {dimension_numbers = #tpu.dot_dimension_numbers<[1], [0], [0], [1], [0, 0, 1, 1], [], []>} : vector<16x32xbf16>, vector<32x2xbf16>, vector<16x2xf32> -> vector<16x2xf32>
    %c0_15 = arith.constant 0 : index
    %c0_16 = arith.constant 0 : index
    %20 = vector.load %arg7[%c0_15, %c0_16] : memref<16x1xf32, #tpu.memory_space<vmem>>, vector<16x1xf32>
    %21 = vector.broadcast %20 : vector<16x1xf32> to vector<16x2xf32>
    %22 = arith.addf %19, %21 : vector<16x2xf32>
    %23 = arith.negf %22 : vector<16x2xf32>
    %24 = math.exp %23 : vector<16x2xf32>
    %cst_17 = arith.constant 1.000000e+00 : f32
    %25 = vector.broadcast %cst_17 : f32 to vector<16x2xf32>
    %26 = arith.addf %25, %24 : vector<16x2xf32>
    %27 = arith.divf %25, %26 : vector<16x2xf32>
    %c0_18 = arith.constant 0 : index
    %c0_19 = arith.constant 0 : index
    %28 = vector.load %arg8[%c0_18, %c0_19] : memref<16x2xf32, #tpu.memory_space<vmem>>, vector<16x2xf32>
    tpu.vector_store %arg8[%c0_18, %c0_19], %27 {strides = array<i32>} : memref<16x2xf32, #tpu.memory_space<vmem>>, vector<16x2xf32>,
    return
  }
  func.func @transform_0(%arg0: i32) -> (i32, i32) {
    %c0_i32 = arith.constant 0 : i32
    %c0_i32_0 = arith.constant 0 : i32
    return %c0_i32, %arg0 : i32, i32
  }
  func.func @transform_1(%arg0: i32) -> (i32, i32) {
    %c0_i32 = arith.constant 0 : i32
    %c0_i32_0 = arith.constant 0 : i32
    %c0_i32_1 = arith.constant 0 : i32
    return %c0_i32, %c0_i32_0 : i32, i32
  }
  func.func @transform_2(%arg0: i32) -> (i32, i32) {
    %c0_i32 = arith.constant 0 : i32
    %c0_i32_0 = arith.constant 0 : i32
    %c0_i32_1 = arith.constant 0 : i32
    return %c0_i32, %c0_i32_0 : i32, i32
  }
  func.func @transform_3(%arg0: i32) -> (i32, i32) {
    %c0_i32 = arith.constant 0 : i32
    %c0_i32_0 = arith.constant 0 : i32
    %c0_i32_1 = arith.constant 0 : i32
    return %c0_i32, %c0_i32_0 : i32, i32
  }
  func.func @transform_4(%arg0: i32) -> (i32, i32) {
    %c0_i32 = arith.constant 0 : i32
    %c0_i32_0 = arith.constant 0 : i32
    %c0_i32_1 = arith.constant 0 : i32
    return %c0_i32, %c0_i32_0 : i32, i32
  }
  func.func @transform_5(%arg0: i32) -> (i32, i32) {
    %c0_i32 = arith.constant 0 : i32
    %c0_i32_0 = arith.constant 0 : i32
    %c0_i32_1 = arith.constant 0 : i32
    return %c0_i32, %c0_i32_0 : i32, i32
  }
  func.func @transform_6(%arg0: i32) -> (i32, i32) {
    %c0_i32 = arith.constant 0 : i32
    %c0_i32_0 = arith.constant 0 : i32
    %c0_i32_1 = arith.constant 0 : i32
    return %c0_i32, %c0_i32_0 : i32, i32
  }
  func.func @transform_7(%arg0: i32) -> (i32, i32) {
    %c0_i32 = arith.constant 0 : i32
    %c0_i32_0 = arith.constant 0 : i32
    return %c0_i32, %arg0 : i32, i32
  }
}

</mosaic_0001>

<llo_original>
// kernel: build_classification_forward.1
$region0: #{build_classification_forward.1}
  #allocation0 [shape = 'u32[]', space=smem, size = 0x4, offset = 0x4, fixed_abs, tag = 'smem constant byte address 0x4 - core index']
  #allocation1 [shape = 'u32[144,128]{1,0:T(1,128)}', space=vmem, size = 0x12000, scoped, tag = 'internal scratch']
  %s0 = inlined_call_operand.vmem [shape: f32[32,2], index: 0, kind: input, shape index: {}]
  %s1 = inlined_call_operand.vmem [shape: bf16[32,32], index: 1, kind: input, shape index: {}]
  %s2 = inlined_call_operand.vmem [shape: f32[32,1], index: 2, kind: input, shape index: {}]
  %s3 = inlined_call_operand.vmem [shape: bf16[32,32], index: 3, kind: input, shape index: {}]
  %s4 = inlined_call_operand.vmem [shape: f32[32,1], index: 4, kind: input, shape index: {}]
  %s5 = inlined_call_operand.vmem [shape: bf16[16,32], index: 5, kind: input, shape index: {}]
  %s6 = inlined_call_operand.vmem [shape: f32[16,1], index: 6, kind: input, shape index: {}]
  %s7 = inlined_call_operand.vmem [shape: f32[16,2], index: 7, kind: output, shape index: {}]
  %s8 = sld [smem:[#allocation0]]
  $region38: #{build_classification_forward.1} parent=0
    _
  %s10 = ssub.s32 1, %s8
  %s11 = scalar_select 0, %s10, %s8
  // Predicated region
  $region2: #{build_classification_forward.1} parent=0 // pred_check
    _
  $region3: #{build_classification_forward.1} parent=0 // pred_check_branch
    %13 = sbr.rel (0) target = $region5
  $region4: #{build_classification_forward.1} parent=0 // pred_region
    _
  $region5: #{build_classification_forward.1} parent=0 // pred_fallthru
    _
  // Predicated region
  $region6: #{build_classification_forward.1} parent=0 // pred_check
    _
  $region7: #{build_classification_forward.1} parent=0 // pred_check_branch
    %15 = sbr.rel (0) target = $region9
  $region8: #{build_classification_forward.1} parent=0 // pred_region
    _
  $region9: #{build_classification_forward.1} parent=0 // pred_fallthru
    _
  // Predicated region
  $region10: #{build_classification_forward.1} parent=0 // pred_check
    _
  $region11: #{build_classification_forward.1} parent=0 // pred_check_branch
    %17 = sbr.rel (0) target = $region13
  $region12: #{build_classification_forward.1} parent=0 // pred_region
    _
  $region13: #{build_classification_forward.1} parent=0 // pred_fallthru
    _
  // Predicated region
  $region14: #{build_classification_forward.1} parent=0 // pred_check
    _
  $region15: #{build_classification_forward.1} parent=0 // pred_check_branch
    %19 = sbr.rel (0) target = $region17
  $region16: #{build_classification_forward.1} parent=0 // pred_region
    _
  $region17: #{build_classification_forward.1} parent=0 // pred_fallthru
    _
  // Predicated region
  $region18: #{build_classification_forward.1} parent=0 // pred_check
    _
  $region19: #{build_classification_forward.1} parent=0 // pred_check_branch
    %21 = sbr.rel (0) target = $region21
  $region20: #{build_classification_forward.1} parent=0 // pred_region
    _
  $region21: #{build_classification_forward.1} parent=0 // pred_fallthru
    _
  // Predicated region
  $region22: #{build_classification_forward.1} parent=0 // pred_check
    _
  $region23: #{build_classification_forward.1} parent=0 // pred_check_branch
    %23 = sbr.rel (0) target = $region25
  $region24: #{build_classification_forward.1} parent=0 // pred_region
    _
  $region25: #{build_classification_forward.1} parent=0 // pred_fallthru
    _
  // Predicated region
  $region26: #{build_classification_forward.1} parent=0 // pred_check
    _
  $region27: #{build_classification_forward.1} parent=0 // pred_check_branch
    %25 = sbr.rel (0) target = $region29
  $region28: #{build_classification_forward.1} parent=0 // pred_region
    _
  $region29: #{build_classification_forward.1} parent=0 // pred_fallthru
    _
  %v27 = vld [vmem:[%s0] sm:$0xff]
  %v28 = vld [vmem:[%s0 + $0x8] sm:$0xff]
  %v29 = vld [vmem:[%s0 + $0x10] sm:$0xff]
  %v30 = vld [vmem:[%s0 + $0x18] sm:$0xff]
  %v31 = vpack.c.bf16 %v28, %v27
  %v32 = vpack.c.bf16 %v30, %v29
  %v33 = vld [vmem:[%s1] sm:$0xf]
  %v34 = vld [vmem:[%s1 + $0x4] sm:$0xf]
  %v35 = vld [vmem:[%s1 + $0x8] sm:$0xf]
  %v36 = vld [vmem:[%s1 + $0xc] sm:$0xf]
  %v37 = vld [vmem:[%s2] sm:$0xff]
  %v38 = vld [vmem:[%s2 + $0x8] sm:$0xff]
  %v39 = vld [vmem:[%s2 + $0x10] sm:$0xff]
  %v40 = vld [vmem:[%s2 + $0x18] sm:$0xff]
  %42 = vset.pattern.permute.xlu0 0
  %43 = vperm.xlu0 %42, %v37
  %v44 = vpop.permute.xlu0 %43
  %47 = vset.pattern.permute.xlu0 0
  %48 = vperm.xlu0 %47, %v38
  %v49 = vpop.permute.xlu0 %48
  %52 = vset.pattern.permute.xlu0 0
  %53 = vperm.xlu0 %52, %v39
  %v54 = vpop.permute.xlu0 %53
  %57 = vset.pattern.permute.xlu0 0
  %58 = vperm.xlu0 %57, %v40
  %v59 = vpop.permute.xlu0 %58
  %v65 = vunpack.c.l.b16 %v33
  %v66 = vunpack.c.l.b16 %v34
  %v67 = vunpack.c.l.b16 %v35
  %v68 = vunpack.c.l.b16 %v36
  %v69 = vpack.c.b16 %v66, %v65
  %v70 = vpack.c.b16 %v68, %v67
  %vm71 = vcmask 261120
  %v73 = vsel %vm71, %v69, 0
  %v76 = vsel %vm71, %v70, 0
  %78 = vmatprep.subr.bf16.mxu0 0
  %79 = vmatpush1.bf16.msra.mxu0 0
  %80 = vmatprep.subr.bf16.mxu0 0
  %81 = vmatpush1.bf16.msra.mxu0 0
  %82 = vmatprep.subr.bf16.mxu0 0
  %83 = vmatpush1.bf16.msra.mxu0 0
  %84 = vmatprep.subr.bf16.mxu0 0
  %85 = vmatpush1.bf16.msra.mxu0 0
  %86 = vmatprep.subr.bf16.mxu0 0
  %87 = vmatpush1.bf16.msra.mxu0 0
  %88 = vmatprep.subr.bf16.mxu0 0
  %89 = vmatpush1.bf16.msra.mxu0 0
  %90 = vmatprep.subr.bf16.mxu0 0
  %91 = vmatpush1.bf16.msra.mxu0 %v32
  %92 = vmatprep.subr.bf16.mxu0 0
  %93 = vmatpush1.bf16.msra.mxu0 %v31
  %94 = vmatprep.subr.bf16.mxu0 0
  %95 = vmatpush2.bf16.msra.mxu0 0
  %96 = vmatprep.subr.bf16.mxu0 0
  %97 = vmatpush2.bf16.msra.mxu0 0
  %98 = vmatprep.subr.bf16.mxu0 0
  %99 = vmatpush2.bf16.msra.mxu0 0
  %100 = vmatprep.subr.bf16.mxu0 0
  %101 = vmatpush2.bf16.msra.mxu0 0
  %102 = vmatprep.subr.bf16.mxu0 0
  %103 = vmatpush2.bf16.msra.mxu0 0
  %104 = vmatprep.subr.bf16.mxu0 0
  %105 = vmatpush2.bf16.msra.mxu0 0
  %106 = vmatprep.subr.bf16.mxu0 0
  %107 = vmatpush2.bf16.msra.mxu0 0
  %108 = vmatprep.subr.bf16.mxu0 0
  %109 = vmatpush2.bf16.msra.mxu0 0
  %110 = vmatprep.mubr.bf16.mxu0 0
  %111 = vmatmul.mubr.bf16.gmra.mxu0 %v73
  %v112 = vpop.f32.mrf.mxu0
  %v113 = vadd.f32 %v44, %v112
  %v114 = vpop.f32.mrf.mxu0
  %v115 = vpop.f32.mrf.mxu0
  %v116 = vadd.f32 %v49, %v115
  %v117 = vpop.f32.mrf.mxu0
  %118 = vmatprep.mubr.bf16.mxu0 0
  %119 = vmatmul.mubr.bf16.gmra.mxu0 %v76
  %v120 = vpop.f32.mrf.mxu0
  %v121 = vadd.f32 %v54, %v120
  %v122 = vpop.f32.mrf.mxu0
  %v123 = vpop.f32.mrf.mxu0
  %v124 = vadd.f32 %v59, %v123
  %v125 = vpop.f32.mrf.mxu0
  %126 = vdwg.mxu0
  %v127 = vmax.f32 %v113, 0.0
  %v128 = vmax.f32 %v116, 0.0
  %v129 = vmax.f32 %v121, 0.0
  %v130 = vmax.f32 %v124, 0.0
  %v131 = vpack.c.bf16 %v128, %v127
  %v132 = vpack.c.bf16 %v130, %v129
  %v133 = vld [vmem:[%s3] sm:$0xf]
  %v134 = vld [vmem:[%s3 + $0x4] sm:$0xf]
  %v135 = vld [vmem:[%s3 + $0x8] sm:$0xf]
  %v136 = vld [vmem:[%s3 + $0xc] sm:$0xf]
  %v137 = vld [vmem:[%s4] sm:$0xff]
  %v138 = vld [vmem:[%s4 + $0x8] sm:$0xff]
  %v139 = vld [vmem:[%s4 + $0x10] sm:$0xff]
  %v140 = vld [vmem:[%s4 + $0x18] sm:$0xff]
  %142 = vset.pattern.permute.xlu0 0
  %143 = vperm.xlu0 %142, %v137
  %v144 = vpop.permute.xlu0 %143
  %147 = vset.pattern.permute.xlu0 0
  %148 = vperm.xlu0 %147, %v138
  %v149 = vpop.permute.xlu0 %148
  %152 = vset.pattern.permute.xlu0 0
  %153 = vperm.xlu0 %152, %v139
  %v154 = vpop.permute.xlu0 %153
  %157 = vset.pattern.permute.xlu0 0
  %158 = vperm.xlu0 %157, %v140
  %v159 = vpop.permute.xlu0 %158
  %v165 = vunpack.c.l.b16 %v133
  %v166 = vunpack.c.l.b16 %v134
  %v167 = vunpack.c.l.b16 %v135
  %v168 = vunpack.c.l.b16 %v136
  %v169 = vpack.c.b16 %v166, %v165
  %v170 = vpack.c.b16 %v168, %v167
  %v172 = vsel %vm71, %v169, 0
  %v175 = vsel %vm71, %v170, 0
  %177 = vmatprep.subr.bf16.mxu0 0
  %178 = vmatpush1.bf16.msra.mxu0 0
  %179 = vmatprep.subr.bf16.mxu0 0
  %180 = vmatpush1.bf16.msra.mxu0 0
  %181 = vmatprep.subr.bf16.mxu0 0
  %182 = vmatpush1.bf16.msra.mxu0 0
  %183 = vmatprep.subr.bf16.mxu0 0
  %184 = vmatpush1.bf16.msra.mxu0 0
  %185 = vmatprep.subr.bf16.mxu0 0
  %186 = vmatpush1.bf16.msra.mxu0 0
  %187 = vmatprep.subr.bf16.mxu0 0
  %188 = vmatpush1.bf16.msra.mxu0 0
  %189 = vmatprep.subr.bf16.mxu0 0
  %190 = vmatpush1.bf16.msra.mxu0 %v132
  %191 = vmatprep.subr.bf16.mxu0 0
  %192 = vmatpush1.bf16.msra.mxu0 %v131
  %193 = vmatprep.subr.bf16.mxu0 0
  %194 = vmatpush2.bf16.msra.mxu0 0
  %195 = vmatprep.subr.bf16.mxu0 0
  %196 = vmatpush2.bf16.msra.mxu0 0
  %197 = vmatprep.subr.bf16.mxu0 0
  %198 = vmatpush2.bf16.msra.mxu0 0
  %199 = vmatprep.subr.bf16.mxu0 0
  %200 = vmatpush2.bf16.msra.mxu0 0
  %201 = vmatprep.subr.bf16.mxu0 0
  %202 = vmatpush2.bf16.msra.mxu0 0
  %203 = vmatprep.subr.bf16.mxu0 0
  %204 = vmatpush2.bf16.msra.mxu0 0
  %205 = vmatprep.subr.bf16.mxu0 0
  %206 = vmatpush2.bf16.msra.mxu0 0
  %207 = vmatprep.subr.bf16.mxu0 0
  %208 = vmatpush2.bf16.msra.mxu0 0
  %209 = vmatprep.mubr.bf16.mxu0 0
  %210 = vmatmul.mubr.bf16.gmra.mxu0 %v172
  %v211 = vpop.f32.mrf.mxu0
  %v212 = vadd.f32 %v144, %v211
  %v213 = vpop.f32.mrf.mxu0
  %v214 = vpop.f32.mrf.mxu0
  %v215 = vadd.f32 %v149, %v214
  %v216 = vpop.f32.mrf.mxu0
  %217 = vmatprep.mubr.bf16.mxu0 0
  %218 = vmatmul.mubr.bf16.gmra.mxu0 %v175
  %v219 = vpop.f32.mrf.mxu0
  %v220 = vadd.f32 %v154, %v219
  %v221 = vpop.f32.mrf.mxu0
  %v222 = vpop.f32.mrf.mxu0
  %v223 = vadd.f32 %v159, %v222
  %v224 = vpop.f32.mrf.mxu0
  %225 = vdwg.mxu0
  %v226 = vmax.f32 %v212, 0.0
  %v227 = vmax.f32 %v215, 0.0
  %v228 = vmax.f32 %v220, 0.0
  %v229 = vmax.f32 %v223, 0.0
  %v230 = vpack.c.bf16 %v227, %v226
  %v231 = vpack.c.bf16 %v229, %v228
  %v232 = vld [vmem:[%s5] sm:$0xf]
  %v233 = vld [vmem:[%s5 + $0x4] sm:$0xf]
  %v234 = vld [vmem:[%s6] sm:$0xff]
  %v235 = vld [vmem:[%s6 + $0x8] sm:$0xff]
  %237 = vset.pattern.permute.xlu0 0
  %238 = vperm.xlu0 %237, %v234
  %v239 = vpop.permute.xlu0 %238
  %242 = vset.pattern.permute.xlu0 0
  %243 = vperm.xlu0 %242, %v235
  %v244 = vpop.permute.xlu0 %243
  %v248 = vunpack.c.l.b16 %v232
  %v249 = vunpack.c.l.b16 %v233
  %v250 = vpack.c.b16 %v249, %v248
  %v252 = vsel %vm71, %v250, 0
  %254 = vmatprep.subr.bf16.mxu0 0
  %255 = vmatpush1.bf16.msra.mxu0 0
  %256 = vmatprep.subr.bf16.mxu0 0
  %257 = vmatpush1.bf16.msra.mxu0 0
  %258 = vmatprep.subr.bf16.mxu0 0
  %259 = vmatpush1.bf16.msra.mxu0 0
  %260 = vmatprep.subr.bf16.mxu0 0
  %261 = vmatpush1.bf16.msra.mxu0 0
  %262 = vmatprep.subr.bf16.mxu0 0
  %263 = vmatpush1.bf16.msra.mxu0 0
  %264 = vmatprep.subr.bf16.mxu0 0
  %265 = vmatpush1.bf16.msra.mxu0 0
  %266 = vmatprep.subr.bf16.mxu0 0
  %267 = vmatpush1.bf16.msra.mxu0 %v231
  %268 = vmatprep.subr.bf16.mxu0 0
  %269 = vmatpush1.bf16.msra.mxu0 %v230
  %270 = vmatprep.subr.bf16.mxu0 0
  %271 = vmatpush2.bf16.msra.mxu0 0
  %272 = vmatprep.subr.bf16.mxu0 0
  %273 = vmatpush2.bf16.msra.mxu0 0
  %274 = vmatprep.subr.bf16.mxu0 0
  %275 = vmatpush2.bf16.msra.mxu0 0
  %276 = vmatprep.subr.bf16.mxu0 0
  %277 = vmatpush2.bf16.msra.mxu0 0
  %278 = vmatprep.subr.bf16.mxu0 0
  %279 = vmatpush2.bf16.msra.mxu0 0
  %280 = vmatprep.subr.bf16.mxu0 0
  %281 = vmatpush2.bf16.msra.mxu0 0
  %282 = vmatprep.subr.bf16.mxu0 0
  %283 = vmatpush2.bf16.msra.mxu0 0
  %284 = vmatprep.subr.bf16.mxu0 0
  %285 = vmatpush2.bf16.msra.mxu0 0
  %286 = vmatprep.mubr.bf16.mxu0 0
  %287 = vmatmul.mubr.bf16.gmra.mxu0 %v252
  %v288 = vpop.f32.mrf.mxu0
  %v289 = vadd.f32 %v239, %v288
  %v290 = vpop.f32.mrf.mxu0
  %v291 = vpop.f32.mrf.mxu0
  %v292 = vadd.f32 %v244, %v291
  %v293 = vpop.f32.mrf.mxu0
  %294 = vdwg.mxu0
  %v295 = vxor.u32 %v289, 2147483648
  %v296 = vxor.u32 %v292, 2147483648
  %v297 = vmul.f32 %v295, 1.442695
  %v298 = vpow.pop %v297
  %v299 = vmul.f32 %v296, 1.442695
  %v300 = vpow.pop %v299
  %v301 = vadd.f32 %v298, 1.0
  %v302 = vadd.f32 %v300, 1.0
  %v303 = vrcp.pop %v301
  %v304 = vmul.f32 1.0, %v303
  %v305 = vrcp.pop %v302
  %v306 = vmul.f32 1.0, %v305
  %vm307 = vcmask 15360
  %308 = vst.msk [vmem:[%s7] sm:$0xff] %vm307, %v304
  %309 = vst.msk [vmem:[%s7 + $0x8] sm:$0xff] %vm307, %v306
  // Predicated region
  $region30: #{build_classification_forward.1} parent=0 // pred_check
    _
  $region31: #{build_classification_forward.1} parent=0 // pred_check_branch
    %311 = sbr.rel (0) target = $region33
  $region32: #{build_classification_forward.1} parent=0 // pred_region
    _
  $region33: #{build_classification_forward.1} parent=0 // pred_fallthru
    _
  // Predicated region
  $region34: #{build_classification_forward.1} parent=0 // pred_check
    _
  $region35: #{build_classification_forward.1} parent=0 // pred_check_branch
    %313 = sbr.rel (0) target = $region37
  $region36: #{build_classification_forward.1} parent=0 // pred_region
    _
  $region37: #{build_classification_forward.1} parent=0 // pred_fallthru
    _

</llo_original>
